<compile_context>
chip_gen: v7x
topology: tpu7x:2x2x1
jax: 0.10.0
libtpu: 0.0.40
codegen_flags: <defaults>
</compile_context>

<pallas_src>
import functools

import jax
import jax.numpy as jnp
from jax import lax
from jax.experimental import pallas as pl
from jax.experimental.pallas import tpu as pltpu


def _round_up(x: int, m: int) -> int:
    return ((x + m - 1) // m) * m


def _nconv_kernel(a_ref, x_ref, o_ref):
    # a_ref: (V, N)            adjacency, resident in VMEM across the grid
    # x_ref: (bf_chunk, N, T)  contiguous slab of x (no HBM relayout)
    # o_ref: (bf_chunk, V, T)  contiguous slab of the output
    bf_chunk = x_ref.shape[0]

    def body(i, carry):
        # One MXU matmul per (b, f) slice; f32 accumulation.
        o_ref[i] = jnp.dot(
            a_ref[...], x_ref[i], preferred_element_type=jnp.float32
        ).astype(o_ref.dtype)
        return carry

    lax.fori_loop(0, bf_chunk, body, 0, unroll=min(8, bf_chunk))


def nconv(A, x, *, bf_chunk=None, compute_dtype=None,
          vmem_block_budget_bytes=20 * 1024 * 1024):
    """A: (V, N), x: (B, F, N, T)  ->  (B, F, V, T).

    compute_dtype: optionally cast A/x (e.g. jnp.bfloat16) for the HBM->VMEM
    transfer and MXU inputs; accumulation stays f32.  Default keeps the input
    dtype (bit-tight vs. the f32 einsum reference).
    """
    V, N = A.shape
    B, F, N2, T = x.shape
    assert N == N2, "contraction dims must match"

    out_dtype = jnp.result_type(A.dtype, x.dtype)
    if compute_dtype is not None:
        A = A.astype(compute_dtype)
        x = x.astype(compute_dtype)

    BF = B * F
    x3 = x.reshape(BF, N, T)  # free reshape (row-major), no HBM relayout

    # ---- auto-size the bf chunk against a VMEM budget ----
    if bf_chunk is None:
        lane, sub = 128, 8
        per_slice = (
            _round_up(N, sub) * _round_up(T, lane) * jnp.dtype(x3.dtype).itemsize
            + _round_up(V, sub) * _round_up(T, lane) * jnp.dtype(out_dtype).itemsize
        ) * 2  # double-buffered x and out blocks
        bf_chunk = max(1, vmem_block_budget_bytes // per_slice)
    bf_chunk = int(min(bf_chunk, 64))                 # keep in-kernel loop short
    if BF >= 2:
        bf_chunk = min(bf_chunk, pl.cdiv(BF, 2))      # >=2 grid steps (v7x: both TCs)
    bf_chunk = max(1, min(bf_chunk, BF))

    grid = (pl.cdiv(BF, bf_chunk),)

    cost = pl.CostEstimate(
        flops=2 * V * N * BF * T,
        transcendentals=0,
        bytes_accessed=(
            A.size * jnp.dtype(A.dtype).itemsize
            + x3.size * jnp.dtype(x3.dtype).itemsize
            + BF * V * T * jnp.dtype(out_dtype).itemsize
        ),
    )

    out3 = pl.pallas_call(
        _nconv_kernel,
        out_shape=jax.ShapeDtypeStruct((BF, V, T), out_dtype),
        grid_spec=pltpu.PrefetchScalarGridSpec(
            num_scalar_prefetch=0,
            grid=grid,
            in_specs=[
                # A: weight-stationary, same (full) block every step.
                pl.BlockSpec((V, N), lambda j: (0, 0)),
                # x: contiguous slab of bf_chunk (b,f) slices per step.
                pl.BlockSpec((bf_chunk, N, T), lambda j: (j, 0, 0)),
            ],
            out_specs=pl.BlockSpec((bf_chunk, V, T), lambda j: (j, 0, 0)),
        ),
        compiler_params=pltpu.CompilerParams(
            dimension_semantics=("parallel",),
            vmem_limit_bytes=48 * 1024 * 1024,
        ),
        cost_estimate=cost,
    )(A, x3)

    return out3.reshape(B, F, V, T)   # free reshape back to the PyTorch layout


if __name__ == "__main__":
    # Small deterministic inputs consistent with the module's einsum.
    B, F, N, T = 2, 4, 16, 8
    V = 16  # output node dimension of A

    key = jax.random.PRNGKey(0)
    k_a, k_x = jax.random.split(key)
    A = jax.random.normal(k_a, (V, N), dtype=jnp.float32)
    x = jax.random.normal(k_x, (B, F, N, T), dtype=jnp.float32)

    out = nconv(A, x)
    out = jax.block_until_ready(out)

    # Correctness check against plain-JAX einsum reference.
    ref = jnp.einsum("vn,bfnt->bfvt", A, x)
    assert out.shape == (B, F, V, T)
    assert jnp.allclose(out, ref, atol=1e-5, rtol=1e-5)

    print("KERNEL_OK")
</pallas_src>

<mosaic_0001>
module attributes {stable_mosaic.version = 11 : i64} {
  func.func @_nconv_kernel(%arg0: i32, %arg1: memref<16x16xf32, #tpu.memory_space<vmem>>, %arg2: memref<4x16x8xf32, #tpu.memory_space<vmem>>, %arg3: memref<4x16x8xf32, #tpu.memory_space<vmem>>) attributes {dimension_semantics = [#tpu.dimension_semantics<parallel>], iteration_bounds = array<i64: 2>, scalar_prefetch = 0 : i64, scratch_operands = 0 : i64, tpu.core_type = #tpu.core_type<tc>, window_params = [{pipeline_mode = #tpu.pipeline_mode<synchronous>, transform_indices = @transform_0, window_bounds = array<i64: 16, 16>}, {transform_indices = @transform_1, window_bounds = array<i64: 4, 16, 8>}, {transform_indices = @transform_2, window_bounds = array<i64: 4, 16, 8>}]} {
    %c0_i32 = arith.constant 0 : i32
    %c0 = arith.constant 0 : index
    %c0_0 = arith.constant 0 : index
    %0 = vector.load %arg1[%c0, %c0_0] : memref<16x16xf32, #tpu.memory_space<vmem>>, vector<16x16xf32>
    %1 = arith.index_cast %c0_i32 : i32 to index
    %c0_1 = arith.constant 0 : index
    %c0_2 = arith.constant 0 : index
    %2 = vector.load %arg2[%1, %c0_1, %c0_2] : memref<4x16x8xf32, #tpu.memory_space<vmem>>, vector<1x16x8xf32>
    %3 = vector.shape_cast %2 : vector<1x16x8xf32> to vector<16x8xf32>
    %cst = arith.constant dense<0.000000e+00> : vector<16x8xf32>
    %4 = tpu.matmul %0, %3, %cst {dimension_numbers = #tpu.dot_dimension_numbers<[1], [0], [0], [1], [0, 0, 1, 1], [], []>} : vector<16x16xf32>, vector<16x8xf32>, vector<16x8xf32> -> vector<16x8xf32>
    %5 = arith.index_cast %c0_i32 : i32 to index
    %c0_3 = arith.constant 0 : index
    %c0_4 = arith.constant 0 : index
    %6 = vector.load %arg3[%5, %c0_3, %c0_4] : memref<4x16x8xf32, #tpu.memory_space<vmem>>, vector<1x16x8xf32>
    %7 = vector.shape_cast %6 : vector<1x16x8xf32> to vector<16x8xf32>
    %8 = vector.shape_cast %4 : vector<16x8xf32> to vector<1x16x8xf32>
    tpu.vector_store %arg3[%5, %c0_3, %c0_4], %8 {strides = array<i32>} : memref<4x16x8xf32, #tpu.memory_space<vmem>>, vector<1x16x8xf32>,
    %c1_i32 = arith.constant 1 : i32
    %c0_5 = arith.constant 0 : index
    %c0_6 = arith.constant 0 : index
    %9 = vector.load %arg1[%c0_5, %c0_6] : memref<16x16xf32, #tpu.memory_space<vmem>>, vector<16x16xf32>
    %10 = arith.index_cast %c1_i32 : i32 to index
    %c0_7 = arith.constant 0 : index
    %c0_8 = arith.constant 0 : index
    %11 = vector.load %arg2[%10, %c0_7, %c0_8] : memref<4x16x8xf32, #tpu.memory_space<vmem>>, vector<1x16x8xf32>
    %12 = vector.shape_cast %11 : vector<1x16x8xf32> to vector<16x8xf32>
    %cst_9 = arith.constant dense<0.000000e+00> : vector<16x8xf32>
    %13 = tpu.matmul %9, %12, %cst_9 {dimension_numbers = #tpu.dot_dimension_numbers<[1], [0], [0], [1], [0, 0, 1, 1], [], []>} : vector<16x16xf32>, vector<16x8xf32>, vector<16x8xf32> -> vector<16x8xf32>
    %14 = arith.index_cast %c1_i32 : i32 to index
    %c0_10 = arith.constant 0 : index
    %c0_11 = arith.constant 0 : index
    %15 = vector.load %arg3[%14, %c0_10, %c0_11] : memref<4x16x8xf32, #tpu.memory_space<vmem>>, vector<1x16x8xf32>
    %16 = vector.shape_cast %15 : vector<1x16x8xf32> to vector<16x8xf32>
    %17 = vector.shape_cast %13 : vector<16x8xf32> to vector<1x16x8xf32>
    tpu.vector_store %arg3[%14, %c0_10, %c0_11], %17 {strides = array<i32>} : memref<4x16x8xf32, #tpu.memory_space<vmem>>, vector<1x16x8xf32>,
    %c2_i32 = arith.constant 2 : i32
    %c0_12 = arith.constant 0 : index
    %c0_13 = arith.constant 0 : index
    %18 = vector.load %arg1[%c0_12, %c0_13] : memref<16x16xf32, #tpu.memory_space<vmem>>, vector<16x16xf32>
    %19 = arith.index_cast %c2_i32 : i32 to index
    %c0_14 = arith.constant 0 : index
    %c0_15 = arith.constant 0 : index
    %20 = vector.load %arg2[%19, %c0_14, %c0_15] : memref<4x16x8xf32, #tpu.memory_space<vmem>>, vector<1x16x8xf32>
    %21 = vector.shape_cast %20 : vector<1x16x8xf32> to vector<16x8xf32>
    %cst_16 = arith.constant dense<0.000000e+00> : vector<16x8xf32>
    %22 = tpu.matmul %18, %21, %cst_16 {dimension_numbers = #tpu.dot_dimension_numbers<[1], [0], [0], [1], [0, 0, 1, 1], [], []>} : vector<16x16xf32>, vector<16x8xf32>, vector<16x8xf32> -> vector<16x8xf32>
    %23 = arith.index_cast %c2_i32 : i32 to index
    %c0_17 = arith.constant 0 : index
    %c0_18 = arith.constant 0 : index
    %24 = vector.load %arg3[%23, %c0_17, %c0_18] : memref<4x16x8xf32, #tpu.memory_space<vmem>>, vector<1x16x8xf32>
    %25 = vector.shape_cast %24 : vector<1x16x8xf32> to vector<16x8xf32>
    %26 = vector.shape_cast %22 : vector<16x8xf32> to vector<1x16x8xf32>
    tpu.vector_store %arg3[%23, %c0_17, %c0_18], %26 {strides = array<i32>} : memref<4x16x8xf32, #tpu.memory_space<vmem>>, vector<1x16x8xf32>,
    %c3_i32 = arith.constant 3 : i32
    %c0_19 = arith.constant 0 : index
    %c0_20 = arith.constant 0 : index
    %27 = vector.load %arg1[%c0_19, %c0_20] : memref<16x16xf32, #tpu.memory_space<vmem>>, vector<16x16xf32>
    %28 = arith.index_cast %c3_i32 : i32 to index
    %c0_21 = arith.constant 0 : index
    %c0_22 = arith.constant 0 : index
    %29 = vector.load %arg2[%28, %c0_21, %c0_22] : memref<4x16x8xf32, #tpu.memory_space<vmem>>, vector<1x16x8xf32>
    %30 = vector.shape_cast %29 : vector<1x16x8xf32> to vector<16x8xf32>
    %cst_23 = arith.constant dense<0.000000e+00> : vector<16x8xf32>
    %31 = tpu.matmul %27, %30, %cst_23 {dimension_numbers = #tpu.dot_dimension_numbers<[1], [0], [0], [1], [0, 0, 1, 1], [], []>} : vector<16x16xf32>, vector<16x8xf32>, vector<16x8xf32> -> vector<16x8xf32>
    %32 = arith.index_cast %c3_i32 : i32 to index
    %c0_24 = arith.constant 0 : index
    %c0_25 = arith.constant 0 : index
    %33 = vector.load %arg3[%32, %c0_24, %c0_25] : memref<4x16x8xf32, #tpu.memory_space<vmem>>, vector<1x16x8xf32>
    %34 = vector.shape_cast %33 : vector<1x16x8xf32> to vector<16x8xf32>
    %35 = vector.shape_cast %31 : vector<16x8xf32> to vector<1x16x8xf32>
    tpu.vector_store %arg3[%32, %c0_24, %c0_25], %35 {strides = array<i32>} : memref<4x16x8xf32, #tpu.memory_space<vmem>>, vector<1x16x8xf32>,
    %c4_i32 = arith.constant 4 : i32
    return
  }
  func.func @transform_0(%arg0: i32) -> (i32, i32) {
    %c0_i32 = arith.constant 0 : i32
    %c0_i32_0 = arith.constant 0 : i32
    %c0_i32_1 = arith.constant 0 : i32
    return %c0_i32, %c0_i32_0 : i32, i32
  }
  func.func @transform_1(%arg0: i32) -> (i32, i32, i32) {
    %c0_i32 = arith.constant 0 : i32
    %c0_i32_0 = arith.constant 0 : i32
    %c0_i32_1 = arith.constant 0 : i32
    return %arg0, %c0_i32, %c0_i32_0 : i32, i32, i32
  }
  func.func @transform_2(%arg0: i32) -> (i32, i32, i32) {
    %c0_i32 = arith.constant 0 : i32
    %c0_i32_0 = arith.constant 0 : i32
    %c0_i32_1 = arith.constant 0 : i32
    return %arg0, %c0_i32, %c0_i32_0 : i32, i32, i32
  }
}

</mosaic_0001>

<llo_original>
// kernel: tpu_custom_call.1
$region0: #{tpu_custom_call.1}
  #allocation0 [shape = 'u32[]', space=smem, size = 0x4, offset = 0x4, fixed_abs, tag = 'smem constant byte address 0x4 - core index']
  #allocation1 [shape = 'u32[144,128]{1,0:T(1,128)}', space=vmem, size = 0x12000, scoped, tag = 'internal scratch']
  %s0 = inlined_call_operand.vmem [shape: f32[16,16], index: 0, kind: input, shape index: {}]
  %s1 = inlined_call_operand.vmem [shape: f32[8,16,8], index: 1, kind: input, shape index: {}]
  %s2 = inlined_call_operand.vmem [shape: f32[8,16,8], index: 2, kind: output, shape index: {}]
  %s3 = sld [smem:[#allocation0]]
  $region41: #{tpu_custom_call.1} parent=0
    _
  %s5 = ssub.s32 1, %s3
  %s6 = scalar_select 0, %s5, %s3
  loop: start=0, step=1, limit=4
  $region2: #{tpu_custom_call.1} parent=0 // loop_pre_header
    _
  $region3: #{tpu_custom_call.1} parent=0 // loop_header
    %s8 = sphi 0, %s12
    %p9 = scmp.ge.s32.totalorder %s8, 4
    %s16 = sphi 0, %s16
    %s18 = sphi 0, %s16
    %s19 = sphi 0, %s18
    %s33 = sphi 0, %s19
    %s39 = sphi 0, %s41
    %s42 = sphi 0, %s39
    %s43 = sphi 0, %s42
    %s59 = sphi 0, %s43
    %s65 = sphi 0, %s67
    %s68 = sphi 0, %s65
    %s69 = sphi 0, %s68
    %s85 = sphi 0, %s69
  $region4: #{tpu_custom_call.1} parent=0 // loop_header_branch
    %11 = sbr.rel (%p9) target = $region8
  $region5: #{tpu_custom_call.1} parent=0 // loop_body
    %s13 = ssub.s32 %s8, 1
    %s14 = ssub.s32 %s8, 2
    %s15 = sadd.s32 %s8, 1
    %s17 = sadd.s32 %s16, 1
    %p20 = scmp.eq.s32.totalorder %s8, 1
    %p21 = scmp.ne.s32.totalorder %s16, %s18
    %p22 = scmp.eq.s32.totalorder %s8, 0
    %p23 = por %p21, %p22
    %p24 = scmp.ne.s32.totalorder %s16, %s18
    %p25 = scmp.eq.s32.totalorder %s13, 1
    %p26 = por %p24, %p25
    %p27 = scmp.ne.s32.totalorder %s18, %s19
    %p28 = scmp.eq.s32.totalorder %s13, 0
    %p29 = por %p27, %p28
    %p30 = scmp.ne.s32.totalorder %s18, %s19
    %p31 = scmp.eq.s32.totalorder %s14, 1
    %p32 = por %p30, %p31
    %p34 = scmp.ne.s32.totalorder %s19, %s33
    %p35 = scmp.eq.s32.totalorder %s14, 0
    %p36 = por %p34, %p35
    %s37 = ssub.s32 %s8, %s15
    %p38 = scmp.eq.s32.totalorder %s37, 0
    %s40 = sadd.s32 %s39, 1
    %s41 = scalar_select %p38, %s39, %s40
    %p44 = pneg %p38
    %p45 = scmp.eq.s32.totalorder %s8, 1
    %p46 = por %p44, %p45
    %p47 = scmp.ne.s32.totalorder %s39, %s42
    %p48 = scmp.eq.s32.totalorder %s8, 0
    %p49 = por %p47, %p48
    %p50 = scmp.ne.s32.totalorder %s39, %s42
    %p51 = scmp.eq.s32.totalorder %s13, 1
    %p52 = por %p50, %p51
    %p53 = scmp.ne.s32.totalorder %s42, %s43
    %p54 = scmp.eq.s32.totalorder %s13, 0
    %p55 = por %p53, %p54
    %p56 = scmp.ne.s32.totalorder %s42, %s43
    %p57 = scmp.eq.s32.totalorder %s14, 1
    %p58 = por %p56, %p57
    %p60 = scmp.ne.s32.totalorder %s43, %s59
    %p61 = scmp.eq.s32.totalorder %s14, 0
    %p62 = por %p60, %p61
    %s63 = ssub.s32 %s8, %s15
    %p64 = scmp.eq.s32.totalorder %s63, 0
    %s66 = sadd.s32 %s65, 1
    %s67 = scalar_select %p64, %s65, %s66
    %p70 = pneg %p64
    %p71 = scmp.eq.s32.totalorder %s8, 1
    %p72 = por %p70, %p71
    %p73 = scmp.ne.s32.totalorder %s65, %s68
    %p74 = scmp.eq.s32.totalorder %s8, 0
    %p75 = por %p73, %p74
    %p76 = scmp.ne.s32.totalorder %s65, %s68
    %p77 = scmp.eq.s32.totalorder %s13, 1
    %p78 = por %p76, %p77
    %p79 = scmp.ne.s32.totalorder %s68, %s69
    %p80 = scmp.eq.s32.totalorder %s13, 0
    %p81 = por %p79, %p80
    %p82 = scmp.ne.s32.totalorder %s68, %s69
    %p83 = scmp.eq.s32.totalorder %s14, 1
    %p84 = por %p82, %p83
    %p86 = scmp.ne.s32.totalorder %s69, %s85
    %p87 = scmp.eq.s32.totalorder %s14, 0
    %p88 = por %p86, %p87
    %p89 = scmp.le.s32.totalorder 1, %s8
    %p90 = scmp.lt.s32.totalorder %s8, 3
    %p91 = pnand %p89, %p90
    %p92 = pneg %p91
    // Predicated region
    $region9: #{tpu_custom_call.1} parent=5 // pred_check
      _
    $region10: #{tpu_custom_call.1} parent=5 // pred_check_branch
      %94 = sbr.rel (%p91) target = $region12
    $region11: #{tpu_custom_call.1} parent=5 // pred_region
      %s95 = ssub.s32 %s8, 1
      // Predicated region
      $region13: #{tpu_custom_call.1} parent=11 // pred_check
        %p96 = pneg %p29
      $region14: #{tpu_custom_call.1} parent=11 // pred_check_branch
        %98 = sbr.rel (%p96) target = $region16
      $region15: #{tpu_custom_call.1} parent=11 // pred_region
        _
      $region16: #{tpu_custom_call.1} parent=11 // pred_fallthru
        _
    $region12: #{tpu_custom_call.1} parent=5 // pred_fallthru
      _
    %p99 = scmp.lt.s32.totalorder %s8, 2
    // Predicated region
    $region17: #{tpu_custom_call.1} parent=5 // pred_check
      %p100 = pneg %p99
    $region18: #{tpu_custom_call.1} parent=5 // pred_check_branch
      %102 = sbr.rel (%p100) target = $region20
    $region19: #{tpu_custom_call.1} parent=5 // pred_region
      // Predicated region
      $region21: #{tpu_custom_call.1} parent=19 // pred_check
        %p103 = pneg %p49
      $region22: #{tpu_custom_call.1} parent=19 // pred_check_branch
        %105 = sbr.rel (%p103) target = $region24
      $region23: #{tpu_custom_call.1} parent=19 // pred_region
        %s106 = smul.u32 4, %s8
        %p107 = scmp.lt.s32.totalorder %s106, 7
        %s108 = scalar_select %p107, %s106, 7
        %s109 = smul.addr %s108, 2
        %s110 = smul.addr %s109, 8
        %s111 = scalar_lea.vmem %s1, %s110
        %s112 = smul.u32 4, %s8
      $region24: #{tpu_custom_call.1} parent=19 // pred_fallthru
        _
    $region20: #{tpu_custom_call.1} parent=5 // pred_fallthru
      _
    %p113 = scmp.le.s32.totalorder 1, %s8
    %p114 = scmp.lt.s32.totalorder %s8, 3
    %p115 = pnand %p113, %p114
    %p116 = pneg %p115
    // Predicated region
    $region25: #{tpu_custom_call.1} parent=5 // pred_check
      _
    $region26: #{tpu_custom_call.1} parent=5 // pred_check_branch
      %118 = sbr.rel (%p115) target = $region28
    $region27: #{tpu_custom_call.1} parent=5 // pred_region
      %s119 = ssub.s32 %s8, 1
      %p120 = pneg %p29
      %p121 = pneg %p26
      %s122 = smul.u32 4, %s13
      %p123 = scmp.lt.s32.totalorder %s122, 7
      %s124 = scalar_select %p123, %s122, 7
      %s125 = smul.addr %s124, 2
      %s126 = smul.addr %s125, 8
      %s127 = scalar_lea.vmem %s1, %s126
      %p128 = pneg %p55
      %p129 = pneg %p52
      %p130 = pneg %p81
      %p131 = pneg %p78
      %s132 = smul.u32 4, %s13
      %p133 = scmp.lt.s32.totalorder %s132, 7
      %s134 = scalar_select %p133, %s132, 7
      %s135 = smul.addr %s134, 2
      %s136 = smul.addr %s135, 8
      %s137 = scalar_lea.vmem %s2, %s136
      %s138 = smul.u32 4, %s13
      %p139 = scmp.lt.s32.totalorder %s138, 7
      %s140 = scalar_select %p139, %s138, 7
      %s141 = smul.addr %s140, 2
      %s142 = smul.addr %s141, 8
      %s143 = scalar_lea.vmem %s1, %s142
      %s144 = smul.u32 4, %s13
      %s145 = smul.u32 4, %s13
      %p146 = scmp.lt.s32.totalorder %s145, 7
      %s147 = scalar_select %p146, %s145, 7
      %s148 = smul.addr %s147, 2
      %s149 = smul.addr %s148, 8
      %s150 = scalar_lea.vmem %s2, %s149
      %s151 = smul.u32 4, %s13
      %v152 = vld [vmem:[%s0] sm:$0xff]
      %v153 = vld [vmem:[%s0 + $0x8] sm:$0xff]
      %v154 = vld [vmem:[%s143] sm:$0xff]
      %v155 = vld [vmem:[%s143 + $0x8] sm:$0xff]
      %vm156 = vcmask 130048
      %v158 = vsel %vm156, %v152, 0
      %v161 = vsel %vm156, %v153, 0
      %163 = vmatprep.subr.mxu0 0.0
      %164 = vmatpush1.msra.mxu0 %v154
      %165 = vmatprep.subr.mxu0 0.0
      %166 = vmatpush1.msra.mxu0 %v155
      %167 = vmatprep.subr.mxu0 0.0
      %168 = vmatpush1.msra.mxu0 0.0
      %169 = vmatprep.subr.mxu0 0.0
      %170 = vmatpush1.msra.mxu0 0.0
      %171 = vmatprep.subr.mxu0 0.0
      %172 = vmatpush1.msra.mxu0 0.0
      %173 = vmatprep.subr.mxu0 0.0
      %174 = vmatpush1.msra.mxu0 0.0
      %175 = vmatprep.subr.mxu0 0.0
      %176 = vmatpush1.msra.mxu0 0.0
      %177 = vmatprep.subr.mxu0 0.0
      %178 = vmatpush1.msra.mxu0 0.0
      %179 = vmatprep.subr.mxu0 0.0
      %180 = vmatpush1.msra.mxu0 0.0
      %181 = vmatprep.subr.mxu0 0.0
      %182 = vmatpush1.msra.mxu0 0.0
      %183 = vmatprep.subr.mxu0 0.0
      %184 = vmatpush1.msra.mxu0 0.0
      %185 = vmatprep.subr.mxu0 0.0
      %186 = vmatpush1.msra.mxu0 0.0
      %187 = vmatprep.subr.mxu0 0.0
      %188 = vmatpush1.msra.mxu0 0.0
      %189 = vmatprep.subr.mxu0 0.0
      %190 = vmatpush1.msra.mxu0 0.0
      %191 = vmatprep.subr.mxu0 0.0
      %192 = vmatpush1.msra.mxu0 0.0
      %193 = vmatprep.subr.mxu0 0.0
      %194 = vmatpush1.msra.mxu0 0.0
      %195 = vmatprep.subr.mxu0 0.0
      %196 = vmatpush1.msra.mxu0 0.0
      %197 = vmatprep.subr.mxu0 0.0
      %198 = vmatpush1.msra.mxu0 0.0
      %199 = vmatprep.subr.mxu0 0.0
      %200 = vmatpush1.msra.mxu0 0.0
      %201 = vmatprep.subr.mxu0 0.0
      %202 = vmatpush1.msra.mxu0 0.0
      %203 = vmatprep.subr.mxu0 0.0
      %204 = vmatpush1.msra.mxu0 0.0
      %205 = vmatprep.subr.mxu0 0.0
      %206 = vmatpush1.msra.mxu0 0.0
      %207 = vmatprep.subr.mxu0 0.0
      %208 = vmatpush1.msra.mxu0 0.0
      %209 = vmatprep.subr.mxu0 0.0
      %210 = vmatpush1.msra.mxu0 0.0
      %211 = vmatprep.subr.mxu0 0.0
      %212 = vmatpush1.msra.mxu0 0.0
      %213 = vmatprep.subr.mxu0 0.0
      %214 = vmatpush1.msra.mxu0 0.0
      %215 = vmatprep.subr.mxu0 0.0
      %216 = vmatpush1.msra.mxu0 0.0
      %217 = vmatprep.subr.mxu0 0.0
      %218 = vmatpush1.msra.mxu0 0.0
      %219 = vmatprep.subr.mxu0 0.0
      %220 = vmatpush1.msra.mxu0 0.0
      %221 = vmatprep.subr.mxu0 0.0
      %222 = vmatpush1.msra.mxu0 0.0
      %223 = vmatprep.subr.mxu0 0.0
      %224 = vmatpush1.msra.mxu0 0.0
      %225 = vmatprep.subr.mxu0 0.0
      %226 = vmatpush1.msra.mxu0 0.0
      %227 = vmatprep.mubr.f32.mxu0 0.0
      %228 = vmatmul.mubr.f32.gmra.mrb[0].mxu0 %v158
      %v229 = vpop.f32.mrb[0].mxu0
      %v230 = vadd.f32 0.0, %v229
      %v231 = vpop.f32.mrb[0].mxu0
      %232 = vmatprep.mubr.f32.mxu0 0.0
      %233 = vmatmul.mubr.f32.gmra.mrb[0].mxu0 %v161
      %v234 = vpop.f32.mrb[0].mxu0
      %v235 = vadd.f32 0.0, %v234
      %v236 = vpop.f32.mrb[0].mxu0
      %237 = vdwg.mxu0
      %vm238 = vcmask 64512
      %239 = vst.msk [vmem:[%s150] sm:$0xff] %vm238, %v230
      %240 = vst.msk [vmem:[%s150 + $0x8] sm:$0xff] %vm238, %v235
      %v241 = vld [vmem:[%s0] sm:$0xff]
      %v242 = vld [vmem:[%s0 + $0x8] sm:$0xff]
      %s243 = scalar_lea.vmem %s143, 16
      %v244 = vld [vmem:[%s243] sm:$0xff]
      %v245 = vld [vmem:[%s243 + $0x8] sm:$0xff]
      %v247 = vsel %vm156, %v241, 0
      %v250 = vsel %vm156, %v242, 0
      %252 = vmatprep.subr.mxu0 0.0
      %253 = vmatpush1.msra.mxu0 %v244
      %254 = vmatprep.subr.mxu0 0.0
      %255 = vmatpush1.msra.mxu0 %v245
      %256 = vmatprep.subr.mxu0 0.0
      %257 = vmatpush1.msra.mxu0 0.0
      %258 = vmatprep.subr.mxu0 0.0
      %259 = vmatpush1.msra.mxu0 0.0
      %260 = vmatprep.subr.mxu0 0.0
      %261 = vmatpush1.msra.mxu0 0.0
      %262 = vmatprep.subr.mxu0 0.0
      %263 = vmatpush1.msra.mxu0 0.0
      %264 = vmatprep.subr.mxu0 0.0
      %265 = vmatpush1.msra.mxu0 0.0
      %266 = vmatprep.subr.mxu0 0.0
      %267 = vmatpush1.msra.mxu0 0.0
      %268 = vmatprep.subr.mxu0 0.0
      %269 = vmatpush1.msra.mxu0 0.0
      %270 = vmatprep.subr.mxu0 0.0
      %271 = vmatpush1.msra.mxu0 0.0
      %272 = vmatprep.subr.mxu0 0.0
      %273 = vmatpush1.msra.mxu0 0.0
      %274 = vmatprep.subr.mxu0 0.0
      %275 = vmatpush1.msra.mxu0 0.0
      %276 = vmatprep.subr.mxu0 0.0
      %277 = vmatpush1.msra.mxu0 0.0
      %278 = vmatprep.subr.mxu0 0.0
      %279 = vmatpush1.msra.mxu0 0.0
      %280 = vmatprep.subr.mxu0 0.0
      %281 = vmatpush1.msra.mxu0 0.0
      %282 = vmatprep.subr.mxu0 0.0
      %283 = vmatpush1.msra.mxu0 0.0
      %284 = vmatprep.subr.mxu0 0.0
      %285 = vmatpush1.msra.mxu0 0.0
      %286 = vmatprep.subr.mxu0 0.0
      %287 = vmatpush1.msra.mxu0 0.0
      %288 = vmatprep.subr.mxu0 0.0
      %289 = vmatpush1.msra.mxu0 0.0
      %290 = vmatprep.subr.mxu0 0.0
      %291 = vmatpush1.msra.mxu0 0.0
      %292 = vmatprep.subr.mxu0 0.0
      %293 = vmatpush1.msra.mxu0 0.0
      %294 = vmatprep.subr.mxu0 0.0
      %295 = vmatpush1.msra.mxu0 0.0
      %296 = vmatprep.subr.mxu0 0.0
      %297 = vmatpush1.msra.mxu0 0.0
      %298 = vmatprep.subr.mxu0 0.0
      %299 = vmatpush1.msra.mxu0 0.0
      %300 = vmatprep.subr.mxu0 0.0
      %301 = vmatpush1.msra.mxu0 0.0
      %302 = vmatprep.subr.mxu0 0.0
      %303 = vmatpush1.msra.mxu0 0.0
      %304 = vmatprep.subr.mxu0 0.0
      %305 = vmatpush1.msra.mxu0 0.0
      %306 = vmatprep.subr.mxu0 0.0
      %307 = vmatpush1.msra.mxu0 0.0
      %308 = vmatprep.subr.mxu0 0.0
      %309 = vmatpush1.msra.mxu0 0.0
      %310 = vmatprep.subr.mxu0 0.0
      %311 = vmatpush1.msra.mxu0 0.0
      %312 = vmatprep.subr.mxu0 0.0
      %313 = vmatpush1.msra.mxu0 0.0
      %314 = vmatprep.subr.mxu0 0.0
      %315 = vmatpush1.msra.mxu0 0.0
      %316 = vmatprep.mubr.f32.mxu0 0.0
      %317 = vmatmul.mubr.f32.gmra.mrb[0].mxu0 %v247
      %v318 = vpop.f32.mrb[0].mxu0
      %v319 = vadd.f32 0.0, %v318
      %v320 = vpop.f32.mrb[0].mxu0
      %321 = vmatprep.mubr.f32.mxu0 0.0
      %322 = vmatmul.mubr.f32.gmra.mrb[0].mxu0 %v250
      %v323 = vpop.f32.mrb[0].mxu0
      %v324 = vadd.f32 0.0, %v323
      %v325 = vpop.f32.mrb[0].mxu0
      %326 = vdwg.mxu0
      %s327 = scalar_lea.vmem %s150, 16
      %328 = vst.msk [vmem:[%s327] sm:$0xff] %vm238, %v319
      %329 = vst.msk [vmem:[%s327 + $0x8] sm:$0xff] %vm238, %v324
      %v330 = vld [vmem:[%s0] sm:$0xff]
      %v331 = vld [vmem:[%s0 + $0x8] sm:$0xff]
      %s332 = scalar_lea.vmem %s143, 32
      %v333 = vld [vmem:[%s332] sm:$0xff]
      %v334 = vld [vmem:[%s332 + $0x8] sm:$0xff]
      %v336 = vsel %vm156, %v330, 0
      %v339 = vsel %vm156, %v331, 0
      %341 = vmatprep.subr.mxu0 0.0
      %342 = vmatpush1.msra.mxu0 %v333
      %343 = vmatprep.subr.mxu0 0.0
      %344 = vmatpush1.msra.mxu0 %v334
      %345 = vmatprep.subr.mxu0 0.0
      %346 = vmatpush1.msra.mxu0 0.0
      %347 = vmatprep.subr.mxu0 0.0
      %348 = vmatpush1.msra.mxu0 0.0
      %349 = vmatprep.subr.mxu0 0.0
      %350 = vmatpush1.msra.mxu0 0.0
      %351 = vmatprep.subr.mxu0 0.0
      %352 = vmatpush1.msra.mxu0 0.0
      %353 = vmatprep.subr.mxu0 0.0
      %354 = vmatpush1.msra.mxu0 0.0
      %355 = vmatprep.subr.mxu0 0.0
      %356 = vmatpush1.msra.mxu0 0.0
      %357 = vmatprep.subr.mxu0 0.0
      %358 = vmatpush1.msra.mxu0 0.0
      %359 = vmatprep.subr.mxu0 0.0
      %360 = vmatpush1.msra.mxu0 0.0
      %361 = vmatprep.subr.mxu0 0.0
      %362 = vmatpush1.msra.mxu0 0.0
      %363 = vmatprep.subr.mxu0 0.0
      %364 = vmatpush1.msra.mxu0 0.0
      %365 = vmatprep.subr.mxu0 0.0
      %366 = vmatpush1.msra.mxu0 0.0
      %367 = vmatprep.subr.mxu0 0.0
      %368 = vmatpush1.msra.mxu0 0.0
      %369 = vmatprep.subr.mxu0 0.0
      %370 = vmatpush1.msra.mxu0 0.0
      %371 = vmatprep.subr.mxu0 0.0
      %372 = vmatpush1.msra.mxu0 0.0
      %373 = vmatprep.subr.mxu0 0.0
      %374 = vmatpush1.msra.mxu0 0.0
      %375 = vmatprep.subr.mxu0 0.0
      %376 = vmatpush1.msra.mxu0 0.0
      %377 = vmatprep.subr.mxu0 0.0
      %378 = vmatpush1.msra.mxu0 0.0
      %379 = vmatprep.subr.mxu0 0.0
      %380 = vmatpush1.msra.mxu0 0.0
      %381 = vmatprep.subr.mxu0 0.0
      %382 = vmatpush1.msra.mxu0 0.0
      %383 = vmatprep.subr.mxu0 0.0
      %384 = vmatpush1.msra.mxu0 0.0
      %385 = vmatprep.subr.mxu0 0.0
      %386 = vmatpush1.msra.mxu0 0.0
      %387 = vmatprep.subr.mxu0 0.0
      %388 = vmatpush1.msra.mxu0 0.0
      %389 = vmatprep.subr.mxu0 0.0
      %390 = vmatpush1.msra.mxu0 0.0
      %391 = vmatprep.subr.mxu0 0.0
      %392 = vmatpush1.msra.mxu0 0.0
      %393 = vmatprep.subr.mxu0 0.0
      %394 = vmatpush1.msra.mxu0 0.0
      %395 = vmatprep.subr.mxu0 0.0
      %396 = vmatpush1.msra.mxu0 0.0
      %397 = vmatprep.subr.mxu0 0.0
      %398 = vmatpush1.msra.mxu0 0.0
      %399 = vmatprep.subr.mxu0 0.0
      %400 = vmatpush1.msra.mxu0 0.0
      %401 = vmatprep.subr.mxu0 0.0
      %402 = vmatpush1.msra.mxu0 0.0
      %403 = vmatprep.subr.mxu0 0.0
      %404 = vmatpush1.msra.mxu0 0.0
      %405 = vmatprep.mubr.f32.mxu0 0.0
      %406 = vmatmul.mubr.f32.gmra.mrb[0].mxu0 %v336
      %v407 = vpop.f32.mrb[0].mxu0
      %v408 = vadd.f32 0.0, %v407
      %v409 = vpop.f32.mrb[0].mxu0
      %410 = vmatprep.mubr.f32.mxu0 0.0
      %411 = vmatmul.mubr.f32.gmra.mrb[0].mxu0 %v339
      %v412 = vpop.f32.mrb[0].mxu0
      %v413 = vadd.f32 0.0, %v412
      %v414 = vpop.f32.mrb[0].mxu0
      %415 = vdwg.mxu0
      %s416 = scalar_lea.vmem %s150, 32
      %417 = vst.msk [vmem:[%s416] sm:$0xff] %vm238, %v408
      %418 = vst.msk [vmem:[%s416 + $0x8] sm:$0xff] %vm238, %v413
      %v419 = vld [vmem:[%s0] sm:$0xff]
      %v420 = vld [vmem:[%s0 + $0x8] sm:$0xff]
      %s421 = scalar_lea.vmem %s143, 48
      %v422 = vld [vmem:[%s421] sm:$0xff]
      %v423 = vld [vmem:[%s421 + $0x8] sm:$0xff]
      %v425 = vsel %vm156, %v419, 0
      %v428 = vsel %vm156, %v420, 0
      %430 = vmatprep.subr.mxu0 0.0
      %431 = vmatpush1.msra.mxu0 %v422
      %432 = vmatprep.subr.mxu0 0.0
      %433 = vmatpush1.msra.mxu0 %v423
      %434 = vmatprep.subr.mxu0 0.0
      %435 = vmatpush1.msra.mxu0 0.0
      %436 = vmatprep.subr.mxu0 0.0
      %437 = vmatpush1.msra.mxu0 0.0
      %438 = vmatprep.subr.mxu0 0.0
      %439 = vmatpush1.msra.mxu0 0.0
      %440 = vmatprep.subr.mxu0 0.0
      %441 = vmatpush1.msra.mxu0 0.0
      %442 = vmatprep.subr.mxu0 0.0
      %443 = vmatpush1.msra.mxu0 0.0
      %444 = vmatprep.subr.mxu0 0.0
      %445 = vmatpush1.msra.mxu0 0.0
      %446 = vmatprep.subr.mxu0 0.0
      %447 = vmatpush1.msra.mxu0 0.0
      %448 = vmatprep.subr.mxu0 0.0
      %449 = vmatpush1.msra.mxu0 0.0
      %450 = vmatprep.subr.mxu0 0.0
      %451 = vmatpush1.msra.mxu0 0.0
      %452 = vmatprep.subr.mxu0 0.0
      %453 = vmatpush1.msra.mxu0 0.0
      %454 = vmatprep.subr.mxu0 0.0
      %455 = vmatpush1.msra.mxu0 0.0
      %456 = vmatprep.subr.mxu0 0.0
      %457 = vmatpush1.msra.mxu0 0.0
      %458 = vmatprep.subr.mxu0 0.0
      %459 = vmatpush1.msra.mxu0 0.0
      %460 = vmatprep.subr.mxu0 0.0
      %461 = vmatpush1.msra.mxu0 0.0
      %462 = vmatprep.subr.mxu0 0.0
      %463 = vmatpush1.msra.mxu0 0.0
      %464 = vmatprep.subr.mxu0 0.0
      %465 = vmatpush1.msra.mxu0 0.0
      %466 = vmatprep.subr.mxu0 0.0
      %467 = vmatpush1.msra.mxu0 0.0
      %468 = vmatprep.subr.mxu0 0.0
      %469 = vmatpush1.msra.mxu0 0.0
      %470 = vmatprep.subr.mxu0 0.0
      %471 = vmatpush1.msra.mxu0 0.0
      %472 = vmatprep.subr.mxu0 0.0
      %473 = vmatpush1.msra.mxu0 0.0
      %474 = vmatprep.subr.mxu0 0.0
      %475 = vmatpush1.msra.mxu0 0.0
      %476 = vmatprep.subr.mxu0 0.0
      %477 = vmatpush1.msra.mxu0 0.0
      %478 = vmatprep.subr.mxu0 0.0
      %479 = vmatpush1.msra.mxu0 0.0
      %480 = vmatprep.subr.mxu0 0.0
      %481 = vmatpush1.msra.mxu0 0.0
      %482 = vmatprep.subr.mxu0 0.0
      %483 = vmatpush1.msra.mxu0 0.0
      %484 = vmatprep.subr.mxu0 0.0
      %485 = vmatpush1.msra.mxu0 0.0
      %486 = vmatprep.subr.mxu0 0.0
      %487 = vmatpush1.msra.mxu0 0.0
      %488 = vmatprep.subr.mxu0 0.0
      %489 = vmatpush1.msra.mxu0 0.0
      %490 = vmatprep.subr.mxu0 0.0
      %491 = vmatpush1.msra.mxu0 0.0
      %492 = vmatprep.subr.mxu0 0.0
      %493 = vmatpush1.msra.mxu0 0.0
      %494 = vmatprep.mubr.f32.mxu0 0.0
      %495 = vmatmul.mubr.f32.gmra.mrb[0].mxu0 %v425
      %v496 = vpop.f32.mrb[0].mxu0
      %v497 = vadd.f32 0.0, %v496
      %v498 = vpop.f32.mrb[0].mxu0
      %499 = vmatprep.mubr.f32.mxu0 0.0
      %500 = vmatmul.mubr.f32.gmra.mrb[0].mxu0 %v428
      %v501 = vpop.f32.mrb[0].mxu0
      %v502 = vadd.f32 0.0, %v501
      %v503 = vpop.f32.mrb[0].mxu0
      %504 = vdwg.mxu0
      %s505 = scalar_lea.vmem %s150, 48
      %506 = vst.msk [vmem:[%s505] sm:$0xff] %vm238, %v497
      %507 = vst.msk [vmem:[%s505 + $0x8] sm:$0xff] %vm238, %v502
      %s508 = smul.u32 4, %s13
      %p509 = scmp.lt.s32.totalorder %s508, 7
      %s510 = scalar_select %p509, %s508, 7
      %s511 = smul.addr %s510, 2
      %s512 = smul.addr %s511, 8
      %s513 = scalar_lea.vmem %s2, %s512
      // Predicated region
      $region29: #{tpu_custom_call.1} parent=27 // pred_check
        %p514 = pneg %p78
      $region30: #{tpu_custom_call.1} parent=27 // pred_check_branch
        %516 = sbr.rel (%p514) target = $region32
      $region31: #{tpu_custom_call.1} parent=27 // pred_region
        %s517 = smul.u32 4, %s13
      $region32: #{tpu_custom_call.1} parent=27 // pred_fallthru
        _
    $region28: #{tpu_custom_call.1} parent=5 // pred_fallthru
      _
    %p518 = scmp.le.s32.totalorder 2, %s8
    // Predicated region
    $region33: #{tpu_custom_call.1} parent=5 // pred_check
      %p519 = pneg %p518
    $region34: #{tpu_custom_call.1} parent=5 // pred_check_branch
      %521 = sbr.rel (%p519) target = $region36
    $region35: #{tpu_custom_call.1} parent=5 // pred_region
      %s522 = ssub.s32 %s8, 2
      // Predicated region
      $region37: #{tpu_custom_call.1} parent=35 // pred_check
        %p523 = pneg %p84
      $region38: #{tpu_custom_call.1} parent=35 // pred_check_branch
        %525 = sbr.rel (%p523) target = $region40
      $region39: #{tpu_custom_call.1} parent=35 // pred_region
        %s526 = smul.u32 4, %s14
        %p527 = scmp.lt.s32.totalorder %s526, 7
        %s528 = scalar_select %p527, %s526, 7
        %s529 = smul.addr %s528, 2
        %s530 = smul.addr %s529, 8
        %s531 = scalar_lea.vmem %s2, %s530
      $region40: #{tpu_custom_call.1} parent=35 // pred_fallthru
        _
    $region36: #{tpu_custom_call.1} parent=5 // pred_fallthru
      _
  $region6: #{tpu_custom_call.1} parent=0 // loop_footer
    %s12 = sadd.s32 1, %s8
  $region7: #{tpu_custom_call.1} parent=0 // loop_footer_branch
    %7 = sbr.rel target = $region3
  $region8: #{tpu_custom_call.1} parent=0 // loop_exit
    _

</llo_original>
